<compile_context>
chip_gen: v5e
topology: v5e:2x2
jax: 0.10.0
libtpu: 0.0.40
codegen_flags: <defaults>
</compile_context>

<pallas_src>
import jax
import jax.numpy as jnp
from jax.experimental import pallas as pl
from jax.experimental.pallas import tpu as pltpu

# Force >=2 grid blocks above this size (v7x has 2 TensorCores per chip).
_MIN_SPLIT_BYTES = 2 * 1024 * 1024
# Ragged inputs up to this size run as a single full-dims block (no padding).
_SMALL_SINGLE_BLOCK_BYTES = 1 * 1024 * 1024


def _chip_config():
    """Return (target_block_bytes, vmem_limit_bytes) for the local TPU generation."""
    kind = ""
    try:
        kind = jax.devices()[0].device_kind.lower()
    except Exception:
        pass
    if "v7" in kind or "7x" in kind:
        # v7x: 3.2 TB/s HBM, but only 64 MiB VMEM per TensorCore.
        # 4 MiB blocks -> 2 I/O x 2 buffers x 4 MiB = 16 MiB live.
        return 4 * 1024 * 1024, 32 * 1024 * 1024
    if "v6" in kind:
        # v6e: ~1.4 TB/s HBM, 128 MiB VMEM. 6 MiB blocks -> 24 MiB live.
        return 6 * 1024 * 1024, 64 * 1024 * 1024
    # v5e and unknown chips: conservative 2 MiB blocks (8 MiB live buffers).
    return 2 * 1024 * 1024, 32 * 1024 * 1024


def _leaky_relu_kernel(alpha_ref, x_ref, o_ref):
    # torch.max(alpha * x, x) -- elementwise maximum, exactly as the spec.
    x = x_ref[...]
    a = alpha_ref[0]  # float32 scalar resident in SMEM
    if x.dtype == jnp.float32:
        o_ref[...] = jnp.maximum(a * x, x)
    elif jnp.issubdtype(x.dtype, jnp.floating):
        # f32 opmath for bf16/fp8 inputs (matches PyTorch scalar-op precision);
        # free on the VPU since this kernel is memory-bound.
        xf = x.astype(jnp.float32)
        o_ref[...] = jnp.maximum(a * xf, xf).astype(o_ref.dtype)
    else:
        o_ref[...] = jnp.maximum(a.astype(x.dtype) * x, x)


def leaky_relu(x: jax.Array, alpha: float = 0.01) -> jax.Array:
    """Apply LeakyReLU (torch.max(alpha*x, x)) elementwise via a Pallas TPU kernel."""
    orig_shape = x.shape
    dtype = x.dtype
    n = x.size
    if n == 0:
        return x

    itemsize = jnp.dtype(dtype).itemsize
    # Sublane multiple for this dtype: 8 (f32), 16 (bf16), 32 (int8/fp8).
    subl = max(8, 32 // itemsize)
    target_bytes, vmem_limit = _chip_config()

    x_flat = jnp.ravel(x)  # metadata-only for contiguous arrays
    pad = 0
    block_rows = None

    # ---- choose a lane-dense 2-D slab; avoid extra HBM passes when possible ----
    lanes = None
    for cand in (2048, 1024, 512, 256, 128):
        if n % cand == 0:
            lanes = cand
            break

    if lanes is None:
        if n * itemsize <= _SMALL_SINGLE_BLOCK_BYTES:
            # Small ragged input: single full-dims block, no padding, no copies.
            lanes = n
            rows = 1
            block_rows = 1
        else:
            # Rare large-ragged fallback: pad only to a 128-lane multiple.
            # TODO(synk): mask the tail in-kernel to drop the pad/slice passes.
            lanes = 128
            pad = (-n) % lanes
            x_flat = jnp.pad(x_flat, (0, pad))
            rows = (n + pad) // lanes
    else:
        rows = n // lanes

    x2d = x_flat.reshape(rows, lanes)
    total_bytes = rows * lanes * itemsize

    if block_rows is None:
        # Generation-aware block sizing (multiple of the sublane count).
        block_rows = max(subl, ((target_bytes // (lanes * itemsize)) // subl) * subl)
        if block_rows > rows:
            block_rows = rows  # single block == full array dims (always legal)
        # Guarantee >=2 grid blocks for mid/large inputs so the "parallel"
        # grid axis can be split across both v7x TensorCores.
        if total_bytes > _MIN_SPLIT_BYTES and pl.cdiv(rows, block_rows) < 2:
            half = pl.cdiv(rows, 2)
            block_rows = ((half + subl - 1) // subl) * subl

    num_blocks = pl.cdiv(rows, block_rows)  # partial last block handled by masking

    alpha_arr = jnp.asarray([alpha], dtype=jnp.float32)

    out2d = pl.pallas_call(
        _leaky_relu_kernel,
        out_shape=jax.ShapeDtypeStruct((rows, lanes), dtype),
        grid_spec=pltpu.PrefetchScalarGridSpec(
            num_scalar_prefetch=0,
            grid=(num_blocks,),
            in_specs=[
                pl.BlockSpec(memory_space=pltpu.MemorySpace.SMEM),    # alpha scalar
                pl.BlockSpec((block_rows, lanes), lambda i: (i, 0)),  # x tile
            ],
            out_specs=pl.BlockSpec((block_rows, lanes), lambda i: (i, 0)),
        ),
        compiler_params=pltpu.CompilerParams(
            dimension_semantics=("parallel",),
            vmem_limit_bytes=vmem_limit,
        ),
        cost_estimate=pl.CostEstimate(
            flops=2 * n, transcendentals=0, bytes_accessed=2 * n * itemsize
        ),
    )(alpha_arr, x2d)

    if pad:
        return out2d.reshape(-1)[:n].reshape(orig_shape)
    return out2d.reshape(orig_shape)


if __name__ == "__main__":
    key = jax.random.PRNGKey(0)
    k1, k2, k3, k4 = jax.random.split(key, 4)
    alpha = 0.01

    # Primary test: small NCHW-like input consistent with a conv-style activation.
    x = jax.random.normal(k1, (2, 4, 16, 16), dtype=jnp.float32)
    y = jax.block_until_ready(leaky_relu(x, alpha=alpha))
    assert y.shape == x.shape and y.dtype == x.dtype
    assert jnp.array_equal(y, jnp.maximum(alpha * x, x)), "mismatch (primary)"

    # Ragged size (n % 128 != 0): single full-dims block path, different alpha.
    x2 = jax.random.normal(k2, (3, 5, 7), dtype=jnp.float32)
    y2 = jax.block_until_ready(leaky_relu(x2, alpha=0.2))
    assert jnp.array_equal(y2, jnp.maximum(0.2 * x2, x2)), "mismatch (ragged)"

    # Multi-block path with a partial final grid block.
    x3 = jax.random.normal(k3, (1100, 2048), dtype=jnp.float32)
    y3 = jax.block_until_ready(leaky_relu(x3, alpha=alpha))
    assert jnp.array_equal(y3, jnp.maximum(alpha * x3, x3)), "mismatch (multi-block)"

    # Mid-size input (~4.7 MiB): exercises the forced >=2-block split on v6e/v7x.
    x4 = jax.random.normal(k4, (600, 2048), dtype=jnp.float32)
    y4 = jax.block_until_ready(leaky_relu(x4, alpha=alpha))
    assert jnp.array_equal(y4, jnp.maximum(alpha * x4, x4)), "mismatch (mid-size)"

    # bf16 input: f32-opmath path.
    x5 = jax.random.normal(k1, (8, 256), dtype=jnp.float32).astype(jnp.bfloat16)
    y5 = jax.block_until_ready(leaky_relu(x5, alpha=alpha))
    x5f = x5.astype(jnp.float32)
    ref5 = jnp.maximum(jnp.float32(alpha) * x5f, x5f).astype(jnp.bfloat16)
    assert y5.dtype == jnp.bfloat16
    assert jnp.array_equal(y5, ref5), "mismatch (bf16)"

    print("KERNEL_OK")
</pallas_src>

<mosaic_0001>
module attributes {stable_mosaic.version = 11 : i64} {
  func.func @_leaky_relu_kernel(%arg0: i32, %arg1: memref<1xf32, #tpu.memory_space<smem>>, %arg2: memref<1x2048xf32, #tpu.memory_space<vmem>>, %arg3: memref<1x2048xf32, #tpu.memory_space<vmem>>) attributes {dimension_semantics = [#tpu.dimension_semantics<parallel>], iteration_bounds = array<i64: 1>, scalar_prefetch = 0 : i64, scratch_operands = 0 : i64, tpu.core_type = #tpu.core_type<tc>, window_params = [{transform_indices = @transform_0, window_bounds = array<i64: 1>}, {transform_indices = @transform_1, window_bounds = array<i64: 1, 2048>}, {transform_indices = @transform_2, window_bounds = array<i64: 1, 2048>}]} {
    %c0 = arith.constant 0 : index
    %c0_0 = arith.constant 0 : index
    %0 = vector.load %arg2[%c0, %c0_0] : memref<1x2048xf32, #tpu.memory_space<vmem>>, vector<1x2048xf32>
    %c0_1 = arith.constant 0 : index
    %1 = memref.load %arg1[%c0_1] : memref<1xf32, #tpu.memory_space<smem>>
    %2 = vector.broadcast %1 : f32 to vector<1x2048xf32>
    %3 = arith.mulf %2, %0 : vector<1x2048xf32>
    %4 = arith.maximumf %3, %0 : vector<1x2048xf32>
    %c0_2 = arith.constant 0 : index
    %c0_3 = arith.constant 0 : index
    %5 = vector.load %arg3[%c0_2, %c0_3] : memref<1x2048xf32, #tpu.memory_space<vmem>>, vector<1x2048xf32>
    tpu.vector_store %arg3[%c0_2, %c0_3], %4 {strides = array<i32>} : memref<1x2048xf32, #tpu.memory_space<vmem>>, vector<1x2048xf32>,
    return
  }
  func.func @transform_0(%arg0: i32) -> i32 {
    %c0_i32 = arith.constant 0 : i32
    %c0_i32_0 = arith.constant 0 : i32
    return %c0_i32 : i32
  }
  func.func @transform_1(%arg0: i32) -> (i32, i32) {
    %c0_i32 = arith.constant 0 : i32
    %c0_i32_0 = arith.constant 0 : i32
    return %arg0, %c0_i32 : i32, i32
  }
  func.func @transform_2(%arg0: i32) -> (i32, i32) {
    %c0_i32 = arith.constant 0 : i32
    %c0_i32_0 = arith.constant 0 : i32
    return %arg0, %c0_i32 : i32, i32
  }
}

</mosaic_0001>

<llo_original>
// kernel: tpu_custom_call.1
$region0: #{tpu_custom_call.1}
  #allocation0 [shape = 'u32[]', space=smem, size = 0x4, offset = 0x4, fixed_abs, tag = 'smem constant byte address 0x4 - core index']
  #allocation1 [shape = 'u32[72,128]{1,0:T(1,128)}', space=vmem, size = 0x9000, scoped, tag = 'internal scratch']
  #allocation2 [shape = 'f32[1]{0:T(128)S(6)}', space=smem, size = 0x200, scoped, tag = 'scoped memory for tpu_custom_call.1']
  %s0 = inlined_call_operand.<no memory space> [shape: f32[1], index: 0, kind: input, shape index: {}]
  %s1 = inlined_call_operand.hbm [shape: f32[1,2048], index: 1, kind: input, shape index: {}]
  %s2 = inlined_call_operand.hbm [shape: f32[1,2048], index: 2, kind: output, shape index: {}]
  %s3 = sld [smem:[#allocation0]]
  $region22: #{tpu_custom_call.1} parent=0
    _
  %s5 = ssub.s32 1, %s3
  %s6 = scalar_select 0, %s5, %s3
  %7 = sst [smem:[#allocation2]] %s0
  $region1: #{tpu_custom_call.1} parent=0
    #allocation3 [shape = 'u8[8192]{0}', space=vmem, size = 0x2000, scoped, tag = 'input window, operand 1, single buffered']
    #allocation4 [shape = 's32[1]{0}', space=sflag, size = 0x4, scoped, tag = 'scoped memory for tpu_custom_call.1']
    #allocation5 [shape = 's32[1]{0}', space=sflag, size = 0x4, scoped, tag = 'scoped memory for tpu_custom_call.1']
    #allocation6 [shape = 'u8[8192]{0}', space=vmem, size = 0x2000, scoped, tag = 'output window, operand 0, single buffered']
    %8 = vsyncpa [#allocation4], 0
    %9 = vsyncpa [#allocation5], 0
    // Predicated region
    $region2: #{tpu_custom_call.1} parent=1 // pred_check
      _
    $region3: #{tpu_custom_call.1} parent=1 // pred_check_branch
      %11 = sbr.rel (0) target = $region5
    $region4: #{tpu_custom_call.1} parent=1 // pred_region
      _
    $region5: #{tpu_custom_call.1} parent=1 // pred_fallthru
      _
    // Predicated region
    $region6: #{tpu_custom_call.1} parent=1 // pred_check
      _
    $region7: #{tpu_custom_call.1} parent=1 // pred_check_branch
      %13 = sbr.rel (0) target = $region9
    $region8: #{tpu_custom_call.1} parent=1 // pred_region
      %15 = vsyncadd [#allocation4], 0
      %s17 = sshll.u32 %s1, 4
      %s18 = int_to_ptr.hbm [resolvable:$true] %s17
      %s19 = sshll.u32 [#allocation3], 4
      %s20 = int_to_ptr.vmem [resolvable:$true] %s19
      %22 = dma.hbm_to_vmem [thread:$0]  %s18, 256, %s20, [#allocation4]
    $region9: #{tpu_custom_call.1} parent=1 // pred_fallthru
      _
    // Predicated region
    $region10: #{tpu_custom_call.1} parent=1 // pred_check
      _
    $region11: #{tpu_custom_call.1} parent=1 // pred_check_branch
      %24 = sbr.rel (0) target = $region13
    $region12: #{tpu_custom_call.1} parent=1 // pred_region
      %26 = dma.done [#allocation4], 256
    $region13: #{tpu_custom_call.1} parent=1 // pred_fallthru
      _
    %v27 = vld [vmem:[#allocation3] sm:$0xff]
    %v28 = vld [vmem:[#allocation3 + $0x8] sm:$0xff]
    %s29 = sld [smem:[#allocation2]]
    %v30 = vstv %s29
    %v31 = vmul.f32 %v30, %v27
    %v32 = vmul.f32 %v30, %v28
    %v33 = vmax.f32 %v31, %v27
    %v34 = vmax.f32 %v32, %v28
    %35 = vst [vmem:[#allocation6] sm:$0xff] %v33
    %36 = vst [vmem:[#allocation6 + $0x8] sm:$0xff] %v34
    // Predicated region
    $region14: #{tpu_custom_call.1} parent=1 // pred_check
      _
    $region15: #{tpu_custom_call.1} parent=1 // pred_check_branch
      %38 = sbr.rel (0) target = $region17
    $region16: #{tpu_custom_call.1} parent=1 // pred_region
      %40 = vsyncadd [#allocation5], 0
      %s42 = sshll.u32 [#allocation6], 4
      %s43 = int_to_ptr.vmem [resolvable:$true] %s42
      %s44 = sshll.u32 %s2, 4
      %s45 = int_to_ptr.hbm [resolvable:$true] %s44
      %47 = dma.vmem_to_hbm [thread:$0]  %s43, 256, %s45, [#allocation5]
    $region17: #{tpu_custom_call.1} parent=1 // pred_fallthru
      _
    // Predicated region
    $region18: #{tpu_custom_call.1} parent=1 // pred_check
      _
    $region19: #{tpu_custom_call.1} parent=1 // pred_check_branch
      %49 = sbr.rel (0) target = $region21
    $region20: #{tpu_custom_call.1} parent=1 // pred_region
      %51 = dma.done [#allocation5], 256
    $region21: #{tpu_custom_call.1} parent=1 // pred_fallthru
      _
    %52 = vsyncpa [#allocation4], 1
    %53 = vsyncpa [#allocation5], 1

</llo_original>
